<compile_context>
chip_gen: v5e
topology: v5e:2x2
jax: 0.10.0
libtpu: 0.0.40
codegen_flags: <defaults>
</compile_context>

<pallas_src>
import jax
import jax.numpy as jnp
from jax import lax
from jax.experimental import pallas as pl
from jax.experimental.pallas import tpu as pltpu


def mlp_kernel(x_ref, w1_ref, b1_ref, w2_ref, b2_ref, o_ref):
    # x_ref : (TB, In) f32   — batch tile, auto-pipelined
    # w1_ref: (H, In)  f32   — PyTorch (out, in) layout, VMEM-resident
    # b1_ref: (H, 1)   f32
    # w2_ref: (H, 1)   f32
    # b2_ref: (1, 1)   f32
    # o_ref : (1, TB)  f32   — batch on the lane axis (dense vst)
    #
    # linear1 on the MXU as an "NT" matmul: contract both last dims (In) so the
    # result comes out already transposed, (H, TB), with batch lane-dense.
    hT = lax.dot_general(
        w1_ref[...], x_ref[...],
        dimension_numbers=(((1,), (1,)), ((), ())),
        preferred_element_type=jnp.float32,
    )                                                       # (H, TB)
    # bias + ReLU, fully lane-dense on the VPU.
    hT = jnp.maximum(hT + b1_ref[...], 0.0)                 # (H, TB)
    # linear2 (output width 1): VPU multiply + sublane reduction over H — no MXU
    # N=1 matmul, no cross-lane relayout; result stays lane-dense.
    y = jnp.sum(hT * w2_ref[...], axis=0, keepdims=True) + b2_ref[...]   # (1, TB)
    # sigmoid via EUP exp + EUP approximate reciprocal (no VALU divide).
    o_ref[...] = pl.reciprocal(1.0 + jnp.exp(-y), approx=True).astype(o_ref.dtype)


def neural_net_forward(x, w1, b1, w2, b2, *, block_b=2048):
    """Forward pass of the PyTorch NeuralNet.

    x : (B, In) f32
    w1: (H, In) f32   (PyTorch nn.Linear weight layout: (out, in))
    b1: (H,)    f32
    w2: (1, H)  f32
    b2: (1,)    f32
    returns (B, 1) f32
    """
    B, In = x.shape
    H = w1.shape[0]

    x = jnp.asarray(x, jnp.float32)
    w1m = jnp.asarray(w1, jnp.float32).reshape(H, In)
    b1c = jnp.asarray(b1, jnp.float32).reshape(H, 1)
    w2c = jnp.asarray(w2, jnp.float32).reshape(H, 1)   # column: broadcast over lanes
    b2c = jnp.asarray(b2, jnp.float32).reshape(1, 1)

    # Batch tile: always a multiple of 128 (lane-dense output store, (8,128) rule),
    # never larger than the rounded batch, and small enough that the grid has at
    # least 2 steps when the batch allows it (v7x megacore split; no-op on v5e/v6e).
    TB = max(128, pl.cdiv(block_b, 128) * 128)
    TB = min(TB, pl.cdiv(B, 128) * 128)
    if B > 128:
        TB = min(TB, max(128, pl.cdiv(pl.cdiv(B, 2), 128) * 128))
    Bp = pl.cdiv(B, TB) * TB

    # Pad only when the batch is ragged w.r.t. the tile (common case: no pad, no
    # extra HBM pass over x).
    if Bp != B:
        x = jnp.pad(x, ((0, Bp - B), (0, 0)))

    out = pl.pallas_call(
        mlp_kernel,
        out_shape=jax.ShapeDtypeStruct((1, Bp), jnp.float32),
        grid=(Bp // TB,),
        in_specs=[
            pl.BlockSpec((TB, In), lambda i: (i, 0)),   # x: only pipelined operand
            pl.BlockSpec((H, In), lambda i: (0, 0)),    # w1: VMEM-resident
            pl.BlockSpec((H, 1), lambda i: (0, 0)),     # b1: resident
            pl.BlockSpec((H, 1), lambda i: (0, 0)),     # w2 column: resident
            pl.BlockSpec((1, 1), lambda i: (0, 0)),     # b2: resident
        ],
        out_specs=pl.BlockSpec((1, TB), lambda i: (0, i)),   # lane-dense output
        compiler_params=pltpu.CompilerParams(
            dimension_semantics=("parallel",),          # megacore split on v7x
            # Transposed layout keeps VMEM tiny: ~TB*64 B per x buffer + ~TB*128 B
            # for hT; 32 MiB leaves huge headroom even on v7x (64 MiB physical).
            vmem_limit_bytes=32 * 1024 * 1024,
        ),
        # If the x DMA is still exposed at very large TB, add
        # pipeline_mode=pl.Buffered(3) on the x BlockSpec only.
    )(x, w1m, b1c, w2c, b2c)

    # Layout plumbing back to the PyTorch-style (B, 1) output.
    return out[0, :B].reshape(B, 1)


if __name__ == "__main__":
    batch = 256
    input_size = 16
    hidden_size = 32

    key = jax.random.PRNGKey(0)
    k_x, k_w1, k_b1, k_w2, k_b2 = jax.random.split(key, 5)

    x = jax.random.normal(k_x, (batch, input_size), dtype=jnp.float32)
    # PyTorch nn.Linear layout: weight (out, in), bias (out,)
    w1 = jax.random.normal(k_w1, (hidden_size, input_size), dtype=jnp.float32) * 0.1
    b1 = jax.random.normal(k_b1, (hidden_size,), dtype=jnp.float32) * 0.1
    w2 = jax.random.normal(k_w2, (1, hidden_size), dtype=jnp.float32) * 0.1
    b2 = jax.random.normal(k_b2, (1,), dtype=jnp.float32) * 0.1

    # block_b=2048, B=256 -> TB=128, grid=(2,): exercises tiling + megacore split.
    out = neural_net_forward(x, w1, b1, w2, b2, block_b=2048)
    out = jax.block_until_ready(out)

    # f32-faithful reference (kernel is all-f32 now; only the approximate
    # reciprocal in the sigmoid deviates, at ~1e-3 absolute).
    h_ref = jnp.maximum(x @ w1.T + b1[None, :], 0.0)
    ref = jax.nn.sigmoid(h_ref @ w2.T + b2[None, :])

    assert out.shape == (batch, 1)
    assert jnp.allclose(out, ref, atol=2e-3), "mismatch vs f32 reference"
    print("KERNEL_OK")
</pallas_src>

<mosaic_0001>
module attributes {stable_mosaic.version = 11 : i64} {
  func.func @mlp_kernel(%arg0: i32, %arg1: memref<128x16xf32, #tpu.memory_space<vmem>>, %arg2: memref<32x16xf32, #tpu.memory_space<vmem>>, %arg3: memref<32x1xf32, #tpu.memory_space<vmem>>, %arg4: memref<32x1xf32, #tpu.memory_space<vmem>>, %arg5: memref<1x1xf32, #tpu.memory_space<vmem>>, %arg6: memref<1x128xf32, #tpu.memory_space<vmem>>) attributes {dimension_semantics = [#tpu.dimension_semantics<parallel>], iteration_bounds = array<i64: 2>, scalar_prefetch = 0 : i64, scratch_operands = 0 : i64, tpu.core_type = #tpu.core_type<tc>, window_params = [{transform_indices = @transform_0, window_bounds = array<i64: 128, 16>}, {pipeline_mode = #tpu.pipeline_mode<synchronous>, transform_indices = @transform_1, window_bounds = array<i64: 32, 16>}, {pipeline_mode = #tpu.pipeline_mode<synchronous>, transform_indices = @transform_2, window_bounds = array<i64: 32, 1>}, {pipeline_mode = #tpu.pipeline_mode<synchronous>, transform_indices = @transform_3, window_bounds = array<i64: 32, 1>}, {pipeline_mode = #tpu.pipeline_mode<synchronous>, transform_indices = @transform_4, window_bounds = array<i64: 1, 1>}, {transform_indices = @transform_5, window_bounds = array<i64: 1, 128>}]} {
    %c0 = arith.constant 0 : index
    %c0_0 = arith.constant 0 : index
    %0 = vector.load %arg2[%c0, %c0_0] : memref<32x16xf32, #tpu.memory_space<vmem>>, vector<32x16xf32>
    %c0_1 = arith.constant 0 : index
    %c0_2 = arith.constant 0 : index
    %1 = vector.load %arg1[%c0_1, %c0_2] : memref<128x16xf32, #tpu.memory_space<vmem>>, vector<128x16xf32>
    %cst = arith.constant dense<0.000000e+00> : vector<32x128xf32>
    %2 = tpu.matmul %0, %1, %cst {dimension_numbers = #tpu.dot_dimension_numbers<[1], [1], [0], [0], [0, 0, 1, 0], [], []>} : vector<32x16xf32>, vector<128x16xf32>, vector<32x128xf32> -> vector<32x128xf32>
    %c0_3 = arith.constant 0 : index
    %c0_4 = arith.constant 0 : index
    %3 = vector.load %arg3[%c0_3, %c0_4] : memref<32x1xf32, #tpu.memory_space<vmem>>, vector<32x1xf32>
    %4 = vector.broadcast %3 : vector<32x1xf32> to vector<32x128xf32>
    %5 = arith.addf %2, %4 : vector<32x128xf32>
    %cst_5 = arith.constant 0.000000e+00 : f32
    %6 = vector.broadcast %cst_5 : f32 to vector<32x128xf32>
    %7 = arith.maximumf %5, %6 : vector<32x128xf32>
    %c0_6 = arith.constant 0 : index
    %c0_7 = arith.constant 0 : index
    %8 = vector.load %arg4[%c0_6, %c0_7] : memref<32x1xf32, #tpu.memory_space<vmem>>, vector<32x1xf32>
    %9 = vector.broadcast %8 : vector<32x1xf32> to vector<32x128xf32>
    %10 = arith.mulf %7, %9 : vector<32x128xf32>
    %cst_8 = arith.constant dense<0.000000e+00> : vector<128xf32>
    %11 = vector.multi_reduction <add>, %10, %cst_8 [0] : vector<32x128xf32> to vector<128xf32>
    %12 = vector.shape_cast %11 : vector<128xf32> to vector<1x128xf32>
    %c0_9 = arith.constant 0 : index
    %c0_10 = arith.constant 0 : index
    %13 = vector.load %arg5[%c0_9, %c0_10] : memref<1x1xf32, #tpu.memory_space<vmem>>, vector<1x1xf32>
    %14 = vector.broadcast %13 : vector<1x1xf32> to vector<1x128xf32>
    %15 = arith.addf %12, %14 : vector<1x128xf32>
    %cst_11 = arith.constant 0.000000e+00 : f32
    %16 = vector.broadcast %cst_11 : f32 to vector<1x128xf32>
    %17 = arith.subf %16, %15 : vector<1x128xf32>
    %18 = math.exp %17 : vector<1x128xf32>
    %cst_12 = arith.constant 1.000000e+00 : f32
    %19 = vector.broadcast %cst_12 : f32 to vector<1x128xf32>
    %20 = arith.addf %19, %18 : vector<1x128xf32>
    %21 = tpu.reciprocal %20 {approx = true} : vector<1x128xf32> -> vector<1x128xf32>
    %c0_13 = arith.constant 0 : index
    %c0_14 = arith.constant 0 : index
    %22 = vector.load %arg6[%c0_13, %c0_14] : memref<1x128xf32, #tpu.memory_space<vmem>>, vector<1x128xf32>
    tpu.vector_store %arg6[%c0_13, %c0_14], %21 {strides = array<i32>} : memref<1x128xf32, #tpu.memory_space<vmem>>, vector<1x128xf32>,
    return
  }
  func.func @transform_0(%arg0: i32) -> (i32, i32) {
    %c0_i32 = arith.constant 0 : i32
    %c0_i32_0 = arith.constant 0 : i32
    return %arg0, %c0_i32 : i32, i32
  }
  func.func @transform_1(%arg0: i32) -> (i32, i32) {
    %c0_i32 = arith.constant 0 : i32
    %c0_i32_0 = arith.constant 0 : i32
    %c0_i32_1 = arith.constant 0 : i32
    return %c0_i32, %c0_i32_0 : i32, i32
  }
  func.func @transform_2(%arg0: i32) -> (i32, i32) {
    %c0_i32 = arith.constant 0 : i32
    %c0_i32_0 = arith.constant 0 : i32
    %c0_i32_1 = arith.constant 0 : i32
    return %c0_i32, %c0_i32_0 : i32, i32
  }
  func.func @transform_3(%arg0: i32) -> (i32, i32) {
    %c0_i32 = arith.constant 0 : i32
    %c0_i32_0 = arith.constant 0 : i32
    %c0_i32_1 = arith.constant 0 : i32
    return %c0_i32, %c0_i32_0 : i32, i32
  }
  func.func @transform_4(%arg0: i32) -> (i32, i32) {
    %c0_i32 = arith.constant 0 : i32
    %c0_i32_0 = arith.constant 0 : i32
    %c0_i32_1 = arith.constant 0 : i32
    return %c0_i32, %c0_i32_0 : i32, i32
  }
  func.func @transform_5(%arg0: i32) -> (i32, i32) {
    %c0_i32 = arith.constant 0 : i32
    %c0_i32_0 = arith.constant 0 : i32
    return %c0_i32, %arg0 : i32, i32
  }
}

</mosaic_0001>

<llo_original>
// kernel: tpu_custom_call.1
$region0: #{tpu_custom_call.1}
  #allocation0 [shape = 'u32[]', space=smem, size = 0x4, offset = 0x4, fixed_abs, tag = 'smem constant byte address 0x4 - core index']
  #allocation1 [shape = 'u32[72,128]{1,0:T(1,128)}', space=vmem, size = 0x9000, scoped, tag = 'internal scratch']
  #allocation2 [shape = 'f32[1,1]{1,0:T(1,128)S(1)}', space=vmem, size = 0x200, scoped, tag = 'scoped memory for tpu_custom_call.1']
  %s0 = inlined_call_operand.vmem [shape: f32[256,16], index: 0, kind: input, shape index: {}]
  %s1 = inlined_call_operand.vmem [shape: f32[32,16], index: 1, kind: input, shape index: {}]
  %s2 = inlined_call_operand.vmem [shape: f32[32,1], index: 2, kind: input, shape index: {}]
  %s3 = inlined_call_operand.vmem [shape: f32[32,1], index: 3, kind: input, shape index: {}]
  %s4 = inlined_call_operand.<no memory space> [shape: f32[1,1], index: 4, kind: input, shape index: {}]
  %s5 = inlined_call_operand.hbm [shape: f32[1,256], index: 5, kind: output, shape index: {}]
  %s6 = sld [smem:[#allocation0]]
  $region53: #{tpu_custom_call.1} parent=0
    _
  %s8 = ssub.s32 1, %s6
  %s9 = scalar_select 0, %s8, %s6
  %v10 = vstv %s4
  %11 = vst [vmem:[#allocation2] sm:$0x1] %v10
  $region1: #{tpu_custom_call.1} parent=0
    #allocation3 [shape = 'u8[1024]{0}', space=vmem, size = 0x400, scoped, tag = 'output window, operand 0']
    #allocation4 [shape = 's32[2]{0}', space=sflag, size = 0x8, scoped, tag = 'scoped memory for tpu_custom_call.1']
    %12 = vsyncpa [#allocation4], 0
    %s13 = scalar_lea.sflag [#allocation4], 1
    %14 = vsyncpa %s13, 0
    loop: start=0, step=1, limit=4
    $region2: #{tpu_custom_call.1} parent=1 // loop_pre_header
      _
    $region3: #{tpu_custom_call.1} parent=1 // loop_header
      %s16 = sphi 0, %s20
      %p17 = scmp.ge.s32.totalorder %s16, 4
      %s26 = sphi 0, %s28
      %s29 = sphi 0, %s26
      %s30 = sphi 0, %s29
      %s46 = sphi 0, %s30
      %s50 = sphi 0, %s50
      %s52 = sphi 0, %s50
      %s53 = sphi 0, %s52
      %s67 = sphi 0, %s53
      %s71 = sphi 0, %s71
      %s73 = sphi 0, %s71
      %s74 = sphi 0, %s73
      %s88 = sphi 0, %s74
      %s92 = sphi 0, %s92
      %s94 = sphi 0, %s92
      %s95 = sphi 0, %s94
      %s109 = sphi 0, %s95
      %s113 = sphi 0, %s113
      %s115 = sphi 0, %s113
      %s116 = sphi 0, %s115
      %s130 = sphi 0, %s116
      %s136 = sphi 0, %s138
      %s139 = sphi 0, %s136
      %s140 = sphi 0, %s139
      %s156 = sphi 0, %s140
    $region4: #{tpu_custom_call.1} parent=1 // loop_header_branch
      %19 = sbr.rel (%p17) target = $region8
    $region5: #{tpu_custom_call.1} parent=1 // loop_body
      %s21 = ssub.s32 %s16, 1
      %s22 = ssub.s32 %s16, 2
      %s23 = sadd.s32 %s16, 1
      %s24 = ssub.s32 %s16, %s23
      %p25 = scmp.eq.s32.totalorder %s24, 0
      %s27 = sadd.s32 %s26, 1
      %s28 = scalar_select %p25, %s26, %s27
      %p31 = pneg %p25
      %p32 = scmp.eq.s32.totalorder %s16, 1
      %p33 = por %p31, %p32
      %p34 = scmp.ne.s32.totalorder %s26, %s29
      %p35 = scmp.eq.s32.totalorder %s16, 0
      %p36 = por %p34, %p35
      %p37 = scmp.ne.s32.totalorder %s26, %s29
      %p38 = scmp.eq.s32.totalorder %s21, 1
      %p39 = por %p37, %p38
      %p40 = scmp.ne.s32.totalorder %s29, %s30
      %p41 = scmp.eq.s32.totalorder %s21, 0
      %p42 = por %p40, %p41
      %p43 = scmp.ne.s32.totalorder %s29, %s30
      %p44 = scmp.eq.s32.totalorder %s22, 1
      %p45 = por %p43, %p44
      %p47 = scmp.ne.s32.totalorder %s30, %s46
      %p48 = scmp.eq.s32.totalorder %s22, 0
      %p49 = por %p47, %p48
      %s51 = sadd.s32 %s50, 1
      %p54 = scmp.eq.s32.totalorder %s16, 1
      %p55 = scmp.ne.s32.totalorder %s50, %s52
      %p56 = scmp.eq.s32.totalorder %s16, 0
      %p57 = por %p55, %p56
      %p58 = scmp.ne.s32.totalorder %s50, %s52
      %p59 = scmp.eq.s32.totalorder %s21, 1
      %p60 = por %p58, %p59
      %p61 = scmp.ne.s32.totalorder %s52, %s53
      %p62 = scmp.eq.s32.totalorder %s21, 0
      %p63 = por %p61, %p62
      %p64 = scmp.ne.s32.totalorder %s52, %s53
      %p65 = scmp.eq.s32.totalorder %s22, 1
      %p66 = por %p64, %p65
      %p68 = scmp.ne.s32.totalorder %s53, %s67
      %p69 = scmp.eq.s32.totalorder %s22, 0
      %p70 = por %p68, %p69
      %s72 = sadd.s32 %s71, 1
      %p75 = scmp.eq.s32.totalorder %s16, 1
      %p76 = scmp.ne.s32.totalorder %s71, %s73
      %p77 = scmp.eq.s32.totalorder %s16, 0
      %p78 = por %p76, %p77
      %p79 = scmp.ne.s32.totalorder %s71, %s73
      %p80 = scmp.eq.s32.totalorder %s21, 1
      %p81 = por %p79, %p80
      %p82 = scmp.ne.s32.totalorder %s73, %s74
      %p83 = scmp.eq.s32.totalorder %s21, 0
      %p84 = por %p82, %p83
      %p85 = scmp.ne.s32.totalorder %s73, %s74
      %p86 = scmp.eq.s32.totalorder %s22, 1
      %p87 = por %p85, %p86
      %p89 = scmp.ne.s32.totalorder %s74, %s88
      %p90 = scmp.eq.s32.totalorder %s22, 0
      %p91 = por %p89, %p90
      %s93 = sadd.s32 %s92, 1
      %p96 = scmp.eq.s32.totalorder %s16, 1
      %p97 = scmp.ne.s32.totalorder %s92, %s94
      %p98 = scmp.eq.s32.totalorder %s16, 0
      %p99 = por %p97, %p98
      %p100 = scmp.ne.s32.totalorder %s92, %s94
      %p101 = scmp.eq.s32.totalorder %s21, 1
      %p102 = por %p100, %p101
      %p103 = scmp.ne.s32.totalorder %s94, %s95
      %p104 = scmp.eq.s32.totalorder %s21, 0
      %p105 = por %p103, %p104
      %p106 = scmp.ne.s32.totalorder %s94, %s95
      %p107 = scmp.eq.s32.totalorder %s22, 1
      %p108 = por %p106, %p107
      %p110 = scmp.ne.s32.totalorder %s95, %s109
      %p111 = scmp.eq.s32.totalorder %s22, 0
      %p112 = por %p110, %p111
      %s114 = sadd.s32 %s113, 1
      %p117 = scmp.eq.s32.totalorder %s16, 1
      %p118 = scmp.ne.s32.totalorder %s113, %s115
      %p119 = scmp.eq.s32.totalorder %s16, 0
      %p120 = por %p118, %p119
      %p121 = scmp.ne.s32.totalorder %s113, %s115
      %p122 = scmp.eq.s32.totalorder %s21, 1
      %p123 = por %p121, %p122
      %p124 = scmp.ne.s32.totalorder %s115, %s116
      %p125 = scmp.eq.s32.totalorder %s21, 0
      %p126 = por %p124, %p125
      %p127 = scmp.ne.s32.totalorder %s115, %s116
      %p128 = scmp.eq.s32.totalorder %s22, 1
      %p129 = por %p127, %p128
      %p131 = scmp.ne.s32.totalorder %s116, %s130
      %p132 = scmp.eq.s32.totalorder %s22, 0
      %p133 = por %p131, %p132
      %s134 = ssub.s32 %s16, %s23
      %p135 = scmp.eq.s32.totalorder %s134, 0
      %s137 = sadd.s32 %s136, 1
      %s138 = scalar_select %p135, %s136, %s137
      %p141 = pneg %p135
      %p142 = scmp.eq.s32.totalorder %s16, 1
      %p143 = por %p141, %p142
      %p144 = scmp.ne.s32.totalorder %s136, %s139
      %p145 = scmp.eq.s32.totalorder %s16, 0
      %p146 = por %p144, %p145
      %p147 = scmp.ne.s32.totalorder %s136, %s139
      %p148 = scmp.eq.s32.totalorder %s21, 1
      %p149 = por %p147, %p148
      %p150 = scmp.ne.s32.totalorder %s139, %s140
      %p151 = scmp.eq.s32.totalorder %s21, 0
      %p152 = por %p150, %p151
      %p153 = scmp.ne.s32.totalorder %s139, %s140
      %p154 = scmp.eq.s32.totalorder %s22, 1
      %p155 = por %p153, %p154
      %p157 = scmp.ne.s32.totalorder %s140, %s156
      %p158 = scmp.eq.s32.totalorder %s22, 0
      %p159 = por %p157, %p158
      %p160 = scmp.le.s32.totalorder 1, %s16
      %p161 = scmp.lt.s32.totalorder %s16, 3
      %p162 = pnand %p160, %p161
      %p163 = pneg %p162
      // Predicated region
      $region9: #{tpu_custom_call.1} parent=5 // pred_check
        _
      $region10: #{tpu_custom_call.1} parent=5 // pred_check_branch
        %165 = sbr.rel (%p162) target = $region12
      $region11: #{tpu_custom_call.1} parent=5 // pred_region
        %s166 = ssub.s32 %s16, 1
        // Predicated region
        $region13: #{tpu_custom_call.1} parent=11 // pred_check
          %p167 = pneg %p63
        $region14: #{tpu_custom_call.1} parent=11 // pred_check_branch
          %169 = sbr.rel (%p167) target = $region16
        $region15: #{tpu_custom_call.1} parent=11 // pred_region
          _
        $region16: #{tpu_custom_call.1} parent=11 // pred_fallthru
          _
        // Predicated region
        $region17: #{tpu_custom_call.1} parent=11 // pred_check
          %p170 = pneg %p84
        $region18: #{tpu_custom_call.1} parent=11 // pred_check_branch
          %172 = sbr.rel (%p170) target = $region20
        $region19: #{tpu_custom_call.1} parent=11 // pred_region
          _
        $region20: #{tpu_custom_call.1} parent=11 // pred_fallthru
          _
        // Predicated region
        $region21: #{tpu_custom_call.1} parent=11 // pred_check
          %p173 = pneg %p105
        $region22: #{tpu_custom_call.1} parent=11 // pred_check_branch
          %175 = sbr.rel (%p173) target = $region24
        $region23: #{tpu_custom_call.1} parent=11 // pred_region
          _
        $region24: #{tpu_custom_call.1} parent=11 // pred_fallthru
          _
        // Predicated region
        $region25: #{tpu_custom_call.1} parent=11 // pred_check
          %p176 = pneg %p126
        $region26: #{tpu_custom_call.1} parent=11 // pred_check_branch
          %178 = sbr.rel (%p176) target = $region28
        $region27: #{tpu_custom_call.1} parent=11 // pred_region
          _
        $region28: #{tpu_custom_call.1} parent=11 // pred_fallthru
          _
      $region12: #{tpu_custom_call.1} parent=5 // pred_fallthru
        _
      %p179 = scmp.lt.s32.totalorder %s16, 2
      // Predicated region
      $region29: #{tpu_custom_call.1} parent=5 // pred_check
        %p180 = pneg %p179
      $region30: #{tpu_custom_call.1} parent=5 // pred_check_branch
        %182 = sbr.rel (%p180) target = $region32
      $region31: #{tpu_custom_call.1} parent=5 // pred_region
        // Predicated region
        $region33: #{tpu_custom_call.1} parent=31 // pred_check
          %p183 = pneg %p36
        $region34: #{tpu_custom_call.1} parent=31 // pred_check_branch
          %185 = sbr.rel (%p183) target = $region36
        $region35: #{tpu_custom_call.1} parent=31 // pred_region
          %s186 = smul.u32 16, %s16
          %p187 = scmp.lt.s32.totalorder %s186, 31
          %s188 = scalar_select %p187, %s186, 31
          %s189 = smul.addr %s188, 8
          %s190 = scalar_lea.vmem %s0, %s189
          %s191 = smul.u32 16, %s16
        $region36: #{tpu_custom_call.1} parent=31 // pred_fallthru
          _
      $region32: #{tpu_custom_call.1} parent=5 // pred_fallthru
        _
      %p192 = scmp.le.s32.totalorder 1, %s16
      %p193 = scmp.lt.s32.totalorder %s16, 3
      %p194 = pnand %p192, %p193
      %p195 = pneg %p194
      // Predicated region
      $region37: #{tpu_custom_call.1} parent=5 // pred_check
        _
      $region38: #{tpu_custom_call.1} parent=5 // pred_check_branch
        %197 = sbr.rel (%p194) target = $region40
      $region39: #{tpu_custom_call.1} parent=5 // pred_region
        %s198 = ssub.s32 %s16, 1
        %s199 = smul.u32 16, %s21
        %p200 = scmp.lt.s32.totalorder %s199, 31
        %s201 = scalar_select %p200, %s199, 31
        %s202 = smul.addr %s201, 8
        %s203 = scalar_lea.vmem %s0, %s202
        %p204 = pneg %p42
        %p205 = pneg %p39
        %p206 = pneg %p63
        %p207 = pneg %p60
        %p208 = pneg %p84
        %p209 = pneg %p81
        %p210 = pneg %p105
        %p211 = pneg %p102
        %p212 = pneg %p126
        %p213 = pneg %p123
        %p214 = pneg %p152
        %p215 = pneg %p149
        %s216 = sand.u32 %s139, 1
        %s217 = scalar_lea.sflag [#allocation4], %s216
        %s218 = sand.u32 %s139, 1
        %s219 = scalar_lea.vmem [#allocation3], %s218
        %s220 = smul.u32 16, %s21
        %p221 = scmp.lt.s32.totalorder %s220, 31
        %s222 = scalar_select %p221, %s220, 31
        %s223 = smul.addr %s222, 8
        %s224 = scalar_lea.vmem %s0, %s223
        %s225 = smul.u32 16, %s21
        %v226 = vld [vmem:[%s1] sm:$0xff]
        %v227 = vld [vmem:[%s1 + $0x8] sm:$0xff]
        %v228 = vld [vmem:[%s1 + $0x10] sm:$0xff]
        %v229 = vld [vmem:[%s1 + $0x18] sm:$0xff]
        %v230 = vld [vmem:[%s224] sm:$0xff]
        %v231 = vld [vmem:[%s224 + $0x8] sm:$0xff]
        %v232 = vld [vmem:[%s224 + $0x10] sm:$0xff]
        %v233 = vld [vmem:[%s224 + $0x18] sm:$0xff]
        %v234 = vld [vmem:[%s224 + $0x20] sm:$0xff]
        %v235 = vld [vmem:[%s224 + $0x28] sm:$0xff]
        %v236 = vld [vmem:[%s224 + $0x30] sm:$0xff]
        %v237 = vld [vmem:[%s224 + $0x38] sm:$0xff]
        %v238 = vld [vmem:[%s224 + $0x40] sm:$0xff]
        %v239 = vld [vmem:[%s224 + $0x48] sm:$0xff]
        %v240 = vld [vmem:[%s224 + $0x50] sm:$0xff]
        %v241 = vld [vmem:[%s224 + $0x58] sm:$0xff]
        %v242 = vld [vmem:[%s224 + $0x60] sm:$0xff]
        %v243 = vld [vmem:[%s224 + $0x68] sm:$0xff]
        %v244 = vld [vmem:[%s224 + $0x70] sm:$0xff]
        %v245 = vld [vmem:[%s224 + $0x78] sm:$0xff]
        %v246 = vld [vmem:[%s2] sm:$0xff]
        %v247 = vld [vmem:[%s2 + $0x8] sm:$0xff]
        %v248 = vld [vmem:[%s2 + $0x10] sm:$0xff]
        %v249 = vld [vmem:[%s2 + $0x18] sm:$0xff]
        %251 = vset.pattern.permute.xlu0 0
        %252 = vperm.xlu0 %251, %v246
        %v253 = vpop.permute.xlu0 %252
        %256 = vset.pattern.permute.xlu0 0
        %257 = vperm.xlu0 %256, %v247
        %v258 = vpop.permute.xlu0 %257
        %261 = vset.pattern.permute.xlu0 0
        %262 = vperm.xlu0 %261, %v248
        %v263 = vpop.permute.xlu0 %262
        %266 = vset.pattern.permute.xlu0 0
        %267 = vperm.xlu0 %266, %v249
        %v268 = vpop.permute.xlu0 %267
        %vm270 = vcmask 130048
        %v272 = vsel %vm270, %v226, 0
        %v275 = vsel %vm270, %v227, 0
        %v278 = vsel %vm270, %v228, 0
        %v281 = vsel %vm270, %v229, 0
        %v284 = vsel %vm270, %v230, 0
        %v287 = vsel %vm270, %v231, 0
        %v290 = vsel %vm270, %v232, 0
        %v293 = vsel %vm270, %v233, 0
        %v296 = vsel %vm270, %v234, 0
        %v299 = vsel %vm270, %v235, 0
        %v302 = vsel %vm270, %v236, 0
        %v305 = vsel %vm270, %v237, 0
        %v308 = vsel %vm270, %v238, 0
        %v311 = vsel %vm270, %v239, 0
        %v314 = vsel %vm270, %v240, 0
        %v317 = vsel %vm270, %v241, 0
        %v320 = vsel %vm270, %v242, 0
        %v323 = vsel %vm270, %v243, 0
        %v326 = vsel %vm270, %v244, 0
        %v329 = vsel %vm270, %v245, 0
        %331 = vmatpush.xpose.msra.mxu0 %v329
        %332 = vmatpush.xpose.msra.mxu0 %v326
        %333 = vmatpush.xpose.msra.mxu0 %v323
        %334 = vmatpush.xpose.msra.mxu0 %v320
        %335 = vmatpush.xpose.msra.mxu0 %v317
        %336 = vmatpush.xpose.msra.mxu0 %v314
        %337 = vmatpush.xpose.msra.mxu0 %v311
        %338 = vmatpush.xpose.msra.mxu0 %v308
        %339 = vmatpush.xpose.msra.mxu0 %v305
        %340 = vmatpush.xpose.msra.mxu0 %v302
        %341 = vmatpush.xpose.msra.mxu0 %v299
        %342 = vmatpush.xpose.msra.mxu0 %v296
        %343 = vmatpush.xpose.msra.mxu0 %v293
        %344 = vmatpush.xpose.msra.mxu0 %v290
        %345 = vmatpush.xpose.msra.mxu0 %v287
        %346 = vmatpush.xpose.msra.mxu0 %v284
        %347 = vmatmul.f32.gmra.mxu0 %v272
        %v348 = vpop.f32.mrf.mxu0
        %v349 = vadd.f32 %v253, %v348
        %350 = vmatmul.f32.gmra.mxu0 %v275
        %v351 = vpop.f32.mrf.mxu0
        %v352 = vadd.f32 %v258, %v351
        %353 = vmatmul.f32.gmra.mxu0 %v278
        %v354 = vpop.f32.mrf.mxu0
        %v355 = vadd.f32 %v263, %v354
        %356 = vmatmul.f32.gmra.mxu0 %v281
        %v357 = vpop.f32.mrf.mxu0
        %v358 = vadd.f32 %v268, %v357
        %359 = vdwg.mxu0
        %v360 = vmax.f32 %v349, 0.0
        %v361 = vmax.f32 %v352, 0.0
        %v362 = vmax.f32 %v355, 0.0
        %v363 = vmax.f32 %v358, 0.0
        %v364 = vld [vmem:[%s3] sm:$0xff]
        %v365 = vld [vmem:[%s3 + $0x8] sm:$0xff]
        %v366 = vld [vmem:[%s3 + $0x10] sm:$0xff]
        %v367 = vld [vmem:[%s3 + $0x18] sm:$0xff]
        %369 = vset.pattern.permute.xlu0 0
        %370 = vperm.xlu0 %369, %v364
        %v371 = vpop.permute.xlu0 %370
        %374 = vset.pattern.permute.xlu0 0
        %375 = vperm.xlu0 %374, %v365
        %v376 = vpop.permute.xlu0 %375
        %379 = vset.pattern.permute.xlu0 0
        %380 = vperm.xlu0 %379, %v366
        %v381 = vpop.permute.xlu0 %380
        %384 = vset.pattern.permute.xlu0 0
        %385 = vperm.xlu0 %384, %v367
        %v386 = vpop.permute.xlu0 %385
        %v388 = vmul.f32 %v360, %v371
        %v389 = vmul.f32 %v361, %v376
        %v390 = vmul.f32 %v362, %v381
        %v391 = vmul.f32 %v363, %v386
        %v392 = vadd.f32 %v388, %v389
        %v393 = vadd.f32 %v392, %v390
        %v394 = vadd.f32 %v393, %v391
        %v395 = vrot.slane %v394, 4
        %v396 = vadd.f32 %v394, %v395
        %v397 = vrot.slane %v396, 2
        %v398 = vadd.f32 %v396, %v397
        %v399 = vrot.slane %v398, 1
        %v400 = vadd.f32 %v398, %v399
        %v401 = vld [vmem:[#allocation2] sm:$0x1]
        %403 = vset.pattern.permute.xlu0 0
        %404 = vperm.xlu0 %403, %v401
        %v405 = vpop.permute.xlu0 %404
        %v407 = vperm.slane %v405, 0
        %v408 = vadd.f32 %v400, %v407
        %v409 = vsub.f32 0.0, %v408
        %v410 = vmul.f32 %v409, 1.442695
        %v411 = vpow.pop %v410
        %v412 = vadd.f32 %v411, 1.0
        %v413 = vrcp.pop %v412
        %414 = vst [vmem:[%s219] sm:$0x1] %v413
        %s415 = sand.u32 %s139, 1
        %s416 = scalar_lea.sflag [#allocation4], %s415
        %s417 = sand.u32 %s139, 1
        %s418 = scalar_lea.vmem [#allocation3], %s417
        // Predicated region
        $region41: #{tpu_custom_call.1} parent=39 // pred_check
          %p419 = pneg %p149
        $region42: #{tpu_custom_call.1} parent=39 // pred_check_branch
          %421 = sbr.rel (%p419) target = $region44
        $region43: #{tpu_custom_call.1} parent=39 // pred_region
          %423 = vsyncadd %s416, 0
          %s424 = scalar_lea.hbm %s5, %s21
          %s426 = sshll.u32 %s418, 4
          %s427 = int_to_ptr.vmem [resolvable:$true] %s426
          %s428 = sshll.u32 %s424, 4
          %s429 = int_to_ptr.hbm [resolvable:$true] %s428
          %431 = dma.vmem_to_hbm [thread:$0]  %s427, 16, %s429, %s416
        $region44: #{tpu_custom_call.1} parent=39 // pred_fallthru
          _
      $region40: #{tpu_custom_call.1} parent=5 // pred_fallthru
        _
      %p432 = scmp.le.s32.totalorder 2, %s16
      // Predicated region
      $region45: #{tpu_custom_call.1} parent=5 // pred_check
        %p433 = pneg %p432
      $region46: #{tpu_custom_call.1} parent=5 // pred_check_branch
        %435 = sbr.rel (%p433) target = $region48
      $region47: #{tpu_custom_call.1} parent=5 // pred_region
        %s436 = ssub.s32 %s16, 2
        // Predicated region
        $region49: #{tpu_custom_call.1} parent=47 // pred_check
          %p437 = pneg %p155
        $region50: #{tpu_custom_call.1} parent=47 // pred_check_branch
          %439 = sbr.rel (%p437) target = $region52
        $region51: #{tpu_custom_call.1} parent=47 // pred_region
          %s440 = sand.u32 %s140, 1
          %s441 = scalar_lea.sflag [#allocation4], %s440
          %s442 = sand.u32 %s140, 1
          %s443 = scalar_lea.vmem [#allocation3], %s442
          %445 = dma.done %s441, 16
        $region52: #{tpu_custom_call.1} parent=47 // pred_fallthru
          _
      $region48: #{tpu_custom_call.1} parent=5 // pred_fallthru
        _
    $region6: #{tpu_custom_call.1} parent=1 // loop_footer
      %s20 = sadd.s32 1, %s16
    $region7: #{tpu_custom_call.1} parent=1 // loop_footer_branch
      %15 = sbr.rel target = $region3
    $region8: #{tpu_custom_call.1} parent=1 // loop_exit
      _
    %446 = vsyncpa [#allocation4], 1
    %s447 = scalar_lea.sflag [#allocation4], 1
    %448 = vsyncpa %s447, 1

</llo_original>
